<compile_context>
chip_gen: v5e
topology: v5e:2x2
jax: 0.10.0
libtpu: 0.0.40
codegen_flags: <defaults>
</compile_context>

<pallas_src>
import functools

import numpy as np

import jax
import jax.numpy as jnp
from jax import lax
from jax.experimental import pallas as pl
from jax.experimental.pallas import tpu as pltpu

EPS = 1e-5


def _bn_relu_conv_kernel(x_ref, scale_ref, shift_ref, w_ref, b_ref, mask_ref,
                         o_ref, cols_ref, *, H, W, Cin_pad, Cout, K, NB,
                         do_activation):
    """One grid step handles NB images.

    x_ref     : (Cin_pad, NB*H*W) bf16   channel-major, lane-dense input
    scale_ref : (Cin_pad, 1) f32         BN scale = gamma * rsqrt(var+eps)
    shift_ref : (Cin_pad, 1) f32         BN shift = beta - mean*scale
    w_ref     : (Cout, K*K*Cin_pad) bf16 conv weight, (kh,kw,ci)-minor
    b_ref     : (Cout, 1) f32            conv bias
    mask_ref  : (K*K, NB*H*W) f32        per-tap 0/1 validity (edge) masks
    o_ref     : (NB, Cout, H*W)          output block (NCHW with HW flattened)
    cols_ref  : VMEM (K*K*Cin_pad, NB*H*W) bf16   im2col scratch
    """
    HW = H * W
    L = NB * HW
    pad = (K - 1) // 2

    # BN (inference) + ReLU in f32. No spatial padding is needed: out-of-image
    # taps are zeroed by the per-tap masks below.
    src = x_ref[...].astype(jnp.float32)                       # (Cin_pad, L)
    if do_activation:
        src = jnp.maximum(src * scale_ref[...] + shift_ref[...], 0.0)

    # im2col via lane rolls (XLU slot) + 0/1 edge-mask multiplies (VPU),
    # stored as bf16 (halves the big scratch and its store traffic).
    # cols[t*Cin_pad + ci, b*HW + p] = act[ci, b*HW + p + delta_t] * mask_t[p]
    for kh in range(K):
        for kw in range(K):
            t = kh * K + kw
            delta = (kh - pad) * W + (kw - pad)
            if delta == 0:
                blk = src                                      # centre tap: no shift, mask == 1
            else:
                rolled = pltpu.roll(src, shift=(-delta) % L, axis=1)
                blk = rolled * mask_ref[pl.ds(t, 1), :]
            cols_ref[pl.ds(t * Cin_pad, Cin_pad), :] = blk.astype(jnp.bfloat16)

    # Single MXU matmul over all NB images with f32 accumulation:
    #   (Cout, K*K*Cin_pad) x (K*K*Cin_pad, NB*H*W) -> (Cout, NB*H*W)
    acc = jnp.dot(w_ref[...], cols_ref[...],
                  preferred_element_type=jnp.float32) + b_ref[...]

    # Lane-aligned per-image stores (HW is a multiple of 128).
    for b in range(NB):
        o_ref[b] = acc[:, b * HW:(b + 1) * HW].astype(o_ref.dtype)


def conv_forward(x_nchw, params, *, kernel_size=3, stride=1,
                 do_activation=True, images_per_block=None,
                 out_dtype=jnp.float32):
    """Pallas equivalent of mtanet.Conv.forward (stride=1, odd kernel)."""
    assert stride == 1  # TODO(synk): strided conv not implemented
    assert kernel_size % 2 == 1, "SAME-style padding requires odd kernel size"

    N, Cin, H, W = x_nchw.shape
    K = kernel_size
    pad = (K - 1) // 2
    HW = H * W
    # TODO(synk): row-strip tiling for H*W not a multiple of 128 / very large maps.
    assert HW % 128 == 0, "H*W must be a multiple of 128 for lane-dense layout"

    w = params["conv_w"]          # (Cout, Cin, K, K)  -- PyTorch layout
    b = params["conv_b"]          # (Cout,)
    Cout = w.shape[0]
    Cin_pad = ((Cin + 7) // 8) * 8   # sublane-aligned channel count

    # Images per grid step: largest divisor of N that fits a modest VMEM
    # budget and still leaves >= min(N, 4) grid steps for pipelining/megacore.
    if images_per_block is None:
        per_img = (K * K * Cin_pad * HW * 2        # bf16 cols scratch
                   + 2 * Cin_pad * HW * 2          # double-buffered bf16 input block
                   + 2 * Cout * HW * 4)            # double-buffered output block
        nb_cap = max(1, (8 * 1024 * 1024) // per_img)
        images_per_block = 1
        for d in range(1, N + 1):
            if N % d == 0 and d <= nb_cap and N // d >= min(N, 4):
                images_per_block = d
    NB = images_per_block
    assert N % NB == 0, (N, NB)
    L = NB * HW

    # Input: channel-major, lane-dense (Cin_pad, N*H*W) bf16 (no spatial pad).
    x_t = jnp.transpose(x_nchw.astype(jnp.float32), (1, 0, 2, 3)).reshape(Cin, N * HW)
    if Cin_pad > Cin:
        x_t = jnp.pad(x_t, ((0, Cin_pad - Cin), (0, 0)))
    x_t = x_t.astype(jnp.bfloat16)

    # Weight as (Cout, K*K*Cin_pad), (kh, kw, ci)-minor, zero-padded channels.
    w_t = jnp.transpose(w, (0, 2, 3, 1))                       # (Cout, K, K, Cin)
    if Cin_pad > Cin:
        w_t = jnp.pad(w_t, ((0, 0), (0, 0), (0, 0), (0, Cin_pad - Cin)))
    wmat = w_t.reshape(Cout, K * K * Cin_pad).astype(jnp.bfloat16)
    bias = b.reshape(Cout, 1).astype(jnp.float32)

    # Fold BN params into scale/shift once (zeros for padded channels).
    if do_activation:
        scale = params["bn_gamma"] * lax.rsqrt(params["bn_var"] + EPS)
        shift = params["bn_beta"] - params["bn_mean"] * scale
    else:
        scale = jnp.ones((Cin,), jnp.float32)
        shift = jnp.zeros((Cin,), jnp.float32)
    scale2 = jnp.pad(scale.astype(jnp.float32), (0, Cin_pad - Cin)).reshape(Cin_pad, 1)
    shift2 = jnp.pad(shift.astype(jnp.float32), (0, Cin_pad - Cin)).reshape(Cin_pad, 1)

    # Per-tap 0/1 validity masks (handle image edges + cross-image roll wrap),
    # tiled over the NB images packed along the lane axis.
    hh = np.arange(H)[:, None]
    ww = np.arange(W)[None, :]
    rows = []
    for kh in range(K):
        for kw in range(K):
            dh, dw = kh - pad, kw - pad
            ok = ((hh + dh >= 0) & (hh + dh < H) &
                  (ww + dw >= 0) & (ww + dw < W))
            rows.append(ok.reshape(-1))
    mask = jnp.asarray(np.tile(np.stack(rows).astype(np.float32), (1, NB)))  # (K*K, L)

    kernel = functools.partial(
        _bn_relu_conv_kernel, H=H, W=W, Cin_pad=Cin_pad, Cout=Cout, K=K,
        NB=NB, do_activation=do_activation)

    out_flat = pl.pallas_call(
        kernel,
        out_shape=jax.ShapeDtypeStruct((N, Cout, HW), out_dtype),
        grid=(N // NB,),
        in_specs=[
            pl.BlockSpec((Cin_pad, L), lambda n: (0, n)),
            pl.BlockSpec((Cin_pad, 1), lambda n: (0, 0)),
            pl.BlockSpec((Cin_pad, 1), lambda n: (0, 0)),
            pl.BlockSpec((Cout, K * K * Cin_pad), lambda n: (0, 0)),
            pl.BlockSpec((Cout, 1), lambda n: (0, 0)),
            pl.BlockSpec((K * K, L), lambda n: (0, 0)),
        ],
        out_specs=pl.BlockSpec((NB, Cout, HW), lambda n: (n, 0, 0)),
        scratch_shapes=[
            pltpu.VMEM((K * K * Cin_pad, L), jnp.bfloat16),    # bf16 im2col columns
        ],
        compiler_params=pltpu.CompilerParams(
            dimension_semantics=("parallel",),
            vmem_limit_bytes=32 * 1024 * 1024),
    )(x_t, scale2, shift2, wmat, bias, mask)

    # Free reshape back to NCHW.
    return out_flat.reshape(N, Cout, H, W)


def _reference(x_nchw, params, *, kernel_size=3, do_activation=True):
    """Plain-JAX reference with the same bf16 operand quantization."""
    K = kernel_size
    pad = (K - 1) // 2
    x = x_nchw.astype(jnp.bfloat16).astype(jnp.float32)   # match kernel's bf16 input
    if do_activation:
        scale = params["bn_gamma"] * lax.rsqrt(params["bn_var"] + EPS)
        shift = params["bn_beta"] - params["bn_mean"] * scale
        x = x * scale[None, :, None, None] + shift[None, :, None, None]
        x = jnp.maximum(x, 0.0)
    xb = x.astype(jnp.bfloat16)
    wb = params["conv_w"].astype(jnp.bfloat16)
    y = lax.conv_general_dilated(
        xb, wb, window_strides=(1, 1),
        padding=[(pad, pad), (pad, pad)],
        dimension_numbers=("NCHW", "OIHW", "NCHW"),
        preferred_element_type=jnp.float32)
    return y + params["conv_b"][None, :, None, None]


def init_params(key, in_channels, out_channels, kernel_size=3):
    ks = jax.random.split(key, 6)
    return {
        "bn_gamma": 1.0 + 0.1 * jax.random.normal(ks[0], (in_channels,), jnp.float32),
        "bn_beta": 0.1 * jax.random.normal(ks[1], (in_channels,), jnp.float32),
        "bn_mean": 0.1 * jax.random.normal(ks[2], (in_channels,), jnp.float32),
        "bn_var": jnp.abs(jax.random.normal(ks[3], (in_channels,), jnp.float32)) + 0.5,
        "conv_w": 0.1 * jax.random.normal(
            ks[4], (out_channels, in_channels, kernel_size, kernel_size), jnp.float32),
        "conv_b": 0.1 * jax.random.normal(ks[5], (out_channels,), jnp.float32),
    }


if __name__ == "__main__":
    key = jax.random.PRNGKey(0)
    k_x, k_p = jax.random.split(key)

    N, Cin, H, W = 2, 4, 16, 16
    Cout, K = 8, 3

    x = jax.random.normal(k_x, (N, Cin, H, W), jnp.float32)   # NCHW like PyTorch
    params = init_params(k_p, Cin, Cout, K)

    # do_activation=True path (BN + ReLU + Conv)
    out = conv_forward(x, params, kernel_size=K, stride=1, do_activation=True)
    out = jax.block_until_ready(out)
    ref = _reference(x, params, kernel_size=K, do_activation=True)
    assert out.shape == (N, Cout, H, W), out.shape
    err = float(jnp.max(jnp.abs(out - ref)))
    assert jnp.allclose(out, ref, atol=1e-3, rtol=1e-3), err

    # do_activation=False path (plain Conv)
    out2 = conv_forward(x, params, kernel_size=K, stride=1, do_activation=False)
    out2 = jax.block_until_ready(out2)
    ref2 = _reference(x, params, kernel_size=K, do_activation=False)
    err2 = float(jnp.max(jnp.abs(out2 - ref2)))
    assert jnp.allclose(out2, ref2, atol=1e-3, rtol=1e-3), err2

    print("KERNEL_OK")
</pallas_src>

<mosaic_0001>
module attributes {stable_mosaic.version = 11 : i64} {
  func.func @_bn_relu_conv_kernel(%arg0: i32, %arg1: memref<8x256xbf16, #tpu.memory_space<vmem>>, %arg2: memref<8x1xf32, #tpu.memory_space<vmem>>, %arg3: memref<8x1xf32, #tpu.memory_space<vmem>>, %arg4: memref<8x72xbf16, #tpu.memory_space<vmem>>, %arg5: memref<8x1xf32, #tpu.memory_space<vmem>>, %arg6: memref<9x256xf32, #tpu.memory_space<vmem>>, %arg7: memref<1x8x256xf32, #tpu.memory_space<vmem>>, %arg8: memref<72x256xbf16, #tpu.memory_space<vmem>>) attributes {dimension_semantics = [#tpu.dimension_semantics<parallel>], iteration_bounds = array<i64: 2>, scalar_prefetch = 0 : i64, scratch_operands = 1 : i64, tpu.core_type = #tpu.core_type<tc>, window_params = [{transform_indices = @transform_0, window_bounds = array<i64: 8, 256>}, {pipeline_mode = #tpu.pipeline_mode<synchronous>, transform_indices = @transform_1, window_bounds = array<i64: 8, 1>}, {pipeline_mode = #tpu.pipeline_mode<synchronous>, transform_indices = @transform_2, window_bounds = array<i64: 8, 1>}, {pipeline_mode = #tpu.pipeline_mode<synchronous>, transform_indices = @transform_3, window_bounds = array<i64: 8, 72>}, {pipeline_mode = #tpu.pipeline_mode<synchronous>, transform_indices = @transform_4, window_bounds = array<i64: 8, 1>}, {pipeline_mode = #tpu.pipeline_mode<synchronous>, transform_indices = @transform_5, window_bounds = array<i64: 9, 256>}, {transform_indices = @transform_6, window_bounds = array<i64: 1, 8, 256>}]} {
    %c0 = arith.constant 0 : index
    %c0_0 = arith.constant 0 : index
    %0 = vector.load %arg1[%c0, %c0_0] : memref<8x256xbf16, #tpu.memory_space<vmem>>, vector<8x256xbf16>
    %1 = arith.extf %0 : vector<8x256xbf16> to vector<8x256xf32>
    %c0_1 = arith.constant 0 : index
    %c0_2 = arith.constant 0 : index
    %2 = vector.load %arg2[%c0_1, %c0_2] : memref<8x1xf32, #tpu.memory_space<vmem>>, vector<8x1xf32>
    %3 = vector.broadcast %2 : vector<8x1xf32> to vector<8x256xf32>
    %4 = arith.mulf %1, %3 : vector<8x256xf32>
    %c0_3 = arith.constant 0 : index
    %c0_4 = arith.constant 0 : index
    %5 = vector.load %arg3[%c0_3, %c0_4] : memref<8x1xf32, #tpu.memory_space<vmem>>, vector<8x1xf32>
    %6 = vector.broadcast %5 : vector<8x1xf32> to vector<8x256xf32>
    %7 = arith.addf %4, %6 : vector<8x256xf32>
    %cst = arith.constant 0.000000e+00 : f32
    %8 = vector.broadcast %cst : f32 to vector<8x256xf32>
    %9 = arith.maximumf %7, %8 : vector<8x256xf32>
    %c17_i32 = arith.constant 17 : i32
    %10 = tpu.dynamic_rotate %9 by %c17_i32 dim 1 : vector<8x256xf32>, i32 -> vector<8x256xf32>
    %c0_5 = arith.constant 0 : index
    %c0_6 = arith.constant 0 : index
    %11 = vector.load %arg6[%c0_5, %c0_6] : memref<9x256xf32, #tpu.memory_space<vmem>>, vector<1x256xf32>
    %12 = vector.broadcast %11 : vector<1x256xf32> to vector<8x256xf32>
    %13 = arith.mulf %10, %12 : vector<8x256xf32>
    %14 = arith.truncf %13 : vector<8x256xf32> to vector<8x256xbf16>
    %c0_7 = arith.constant 0 : index
    %c0_8 = arith.constant 0 : index
    %15 = vector.load %arg8[%c0_7, %c0_8] : memref<72x256xbf16, #tpu.memory_space<vmem>>, vector<8x256xbf16>
    tpu.vector_store %arg8[%c0_7, %c0_8], %14 {strides = array<i32>} : memref<72x256xbf16, #tpu.memory_space<vmem>>, vector<8x256xbf16>,
    %c16_i32 = arith.constant 16 : i32
    %16 = tpu.dynamic_rotate %9 by %c16_i32 dim 1 : vector<8x256xf32>, i32 -> vector<8x256xf32>
    %c1 = arith.constant 1 : index
    %c0_9 = arith.constant 0 : index
    %17 = vector.load %arg6[%c1, %c0_9] : memref<9x256xf32, #tpu.memory_space<vmem>>, vector<1x256xf32>
    %18 = vector.broadcast %17 : vector<1x256xf32> to vector<8x256xf32>
    %19 = arith.mulf %16, %18 : vector<8x256xf32>
    %20 = arith.truncf %19 : vector<8x256xf32> to vector<8x256xbf16>
    %c8 = arith.constant 8 : index
    %c0_10 = arith.constant 0 : index
    %21 = vector.load %arg8[%c8, %c0_10] : memref<72x256xbf16, #tpu.memory_space<vmem>>, vector<8x256xbf16>
    tpu.vector_store %arg8[%c8, %c0_10], %20 {strides = array<i32>} : memref<72x256xbf16, #tpu.memory_space<vmem>>, vector<8x256xbf16>,
    %c15_i32 = arith.constant 15 : i32
    %22 = tpu.dynamic_rotate %9 by %c15_i32 dim 1 : vector<8x256xf32>, i32 -> vector<8x256xf32>
    %c2 = arith.constant 2 : index
    %c0_11 = arith.constant 0 : index
    %23 = vector.load %arg6[%c2, %c0_11] : memref<9x256xf32, #tpu.memory_space<vmem>>, vector<1x256xf32>
    %24 = vector.broadcast %23 : vector<1x256xf32> to vector<8x256xf32>
    %25 = arith.mulf %22, %24 : vector<8x256xf32>
    %26 = arith.truncf %25 : vector<8x256xf32> to vector<8x256xbf16>
    %c16 = arith.constant 16 : index
    %c0_12 = arith.constant 0 : index
    %27 = vector.load %arg8[%c16, %c0_12] : memref<72x256xbf16, #tpu.memory_space<vmem>>, vector<8x256xbf16>
    tpu.vector_store %arg8[%c16, %c0_12], %26 {strides = array<i32>} : memref<72x256xbf16, #tpu.memory_space<vmem>>, vector<8x256xbf16>,
    %c1_i32 = arith.constant 1 : i32
    %28 = tpu.dynamic_rotate %9 by %c1_i32 dim 1 : vector<8x256xf32>, i32 -> vector<8x256xf32>
    %c3 = arith.constant 3 : index
    %c0_13 = arith.constant 0 : index
    %29 = vector.load %arg6[%c3, %c0_13] : memref<9x256xf32, #tpu.memory_space<vmem>>, vector<1x256xf32>
    %30 = vector.broadcast %29 : vector<1x256xf32> to vector<8x256xf32>
    %31 = arith.mulf %28, %30 : vector<8x256xf32>
    %32 = arith.truncf %31 : vector<8x256xf32> to vector<8x256xbf16>
    %c24 = arith.constant 24 : index
    %c0_14 = arith.constant 0 : index
    %33 = vector.load %arg8[%c24, %c0_14] : memref<72x256xbf16, #tpu.memory_space<vmem>>, vector<8x256xbf16>
    tpu.vector_store %arg8[%c24, %c0_14], %32 {strides = array<i32>} : memref<72x256xbf16, #tpu.memory_space<vmem>>, vector<8x256xbf16>,
    %34 = arith.truncf %9 : vector<8x256xf32> to vector<8x256xbf16>
    %c32 = arith.constant 32 : index
    %c0_15 = arith.constant 0 : index
    %35 = vector.load %arg8[%c32, %c0_15] : memref<72x256xbf16, #tpu.memory_space<vmem>>, vector<8x256xbf16>
    tpu.vector_store %arg8[%c32, %c0_15], %34 {strides = array<i32>} : memref<72x256xbf16, #tpu.memory_space<vmem>>, vector<8x256xbf16>,
    %c255_i32 = arith.constant 255 : i32
    %36 = tpu.dynamic_rotate %9 by %c255_i32 dim 1 : vector<8x256xf32>, i32 -> vector<8x256xf32>
    %c5 = arith.constant 5 : index
    %c0_16 = arith.constant 0 : index
    %37 = vector.load %arg6[%c5, %c0_16] : memref<9x256xf32, #tpu.memory_space<vmem>>, vector<1x256xf32>
    %38 = vector.broadcast %37 : vector<1x256xf32> to vector<8x256xf32>
    %39 = arith.mulf %36, %38 : vector<8x256xf32>
    %40 = arith.truncf %39 : vector<8x256xf32> to vector<8x256xbf16>
    %c40 = arith.constant 40 : index
    %c0_17 = arith.constant 0 : index
    %41 = vector.load %arg8[%c40, %c0_17] : memref<72x256xbf16, #tpu.memory_space<vmem>>, vector<8x256xbf16>
    tpu.vector_store %arg8[%c40, %c0_17], %40 {strides = array<i32>} : memref<72x256xbf16, #tpu.memory_space<vmem>>, vector<8x256xbf16>,
    %c241_i32 = arith.constant 241 : i32
    %42 = tpu.dynamic_rotate %9 by %c241_i32 dim 1 : vector<8x256xf32>, i32 -> vector<8x256xf32>
    %c6 = arith.constant 6 : index
    %c0_18 = arith.constant 0 : index
    %43 = vector.load %arg6[%c6, %c0_18] : memref<9x256xf32, #tpu.memory_space<vmem>>, vector<1x256xf32>
    %44 = vector.broadcast %43 : vector<1x256xf32> to vector<8x256xf32>
    %45 = arith.mulf %42, %44 : vector<8x256xf32>
    %46 = arith.truncf %45 : vector<8x256xf32> to vector<8x256xbf16>
    %c48 = arith.constant 48 : index
    %c0_19 = arith.constant 0 : index
    %47 = vector.load %arg8[%c48, %c0_19] : memref<72x256xbf16, #tpu.memory_space<vmem>>, vector<8x256xbf16>
    tpu.vector_store %arg8[%c48, %c0_19], %46 {strides = array<i32>} : memref<72x256xbf16, #tpu.memory_space<vmem>>, vector<8x256xbf16>,
    %c240_i32 = arith.constant 240 : i32
    %48 = tpu.dynamic_rotate %9 by %c240_i32 dim 1 : vector<8x256xf32>, i32 -> vector<8x256xf32>
    %c7 = arith.constant 7 : index
    %c0_20 = arith.constant 0 : index
    %49 = vector.load %arg6[%c7, %c0_20] : memref<9x256xf32, #tpu.memory_space<vmem>>, vector<1x256xf32>
    %50 = vector.broadcast %49 : vector<1x256xf32> to vector<8x256xf32>
    %51 = arith.mulf %48, %50 : vector<8x256xf32>
    %52 = arith.truncf %51 : vector<8x256xf32> to vector<8x256xbf16>
    %c56 = arith.constant 56 : index
    %c0_21 = arith.constant 0 : index
    %53 = vector.load %arg8[%c56, %c0_21] : memref<72x256xbf16, #tpu.memory_space<vmem>>, vector<8x256xbf16>
    tpu.vector_store %arg8[%c56, %c0_21], %52 {strides = array<i32>} : memref<72x256xbf16, #tpu.memory_space<vmem>>, vector<8x256xbf16>,
    %c239_i32 = arith.constant 239 : i32
    %54 = tpu.dynamic_rotate %9 by %c239_i32 dim 1 : vector<8x256xf32>, i32 -> vector<8x256xf32>
    %c8_22 = arith.constant 8 : index
    %c0_23 = arith.constant 0 : index
    %55 = vector.load %arg6[%c8_22, %c0_23] : memref<9x256xf32, #tpu.memory_space<vmem>>, vector<1x256xf32>
    %56 = vector.broadcast %55 : vector<1x256xf32> to vector<8x256xf32>
    %57 = arith.mulf %54, %56 : vector<8x256xf32>
    %58 = arith.truncf %57 : vector<8x256xf32> to vector<8x256xbf16>
    %c64 = arith.constant 64 : index
    %c0_24 = arith.constant 0 : index
    %59 = vector.load %arg8[%c64, %c0_24] : memref<72x256xbf16, #tpu.memory_space<vmem>>, vector<8x256xbf16>
    tpu.vector_store %arg8[%c64, %c0_24], %58 {strides = array<i32>} : memref<72x256xbf16, #tpu.memory_space<vmem>>, vector<8x256xbf16>,
    %c0_25 = arith.constant 0 : index
    %c0_26 = arith.constant 0 : index
    %60 = vector.load %arg4[%c0_25, %c0_26] : memref<8x72xbf16, #tpu.memory_space<vmem>>, vector<8x72xbf16>
    %c0_27 = arith.constant 0 : index
    %c0_28 = arith.constant 0 : index
    %61 = vector.load %arg8[%c0_27, %c0_28] : memref<72x256xbf16, #tpu.memory_space<vmem>>, vector<72x256xbf16>
    %cst_29 = arith.constant dense<0.000000e+00> : vector<8x256xf32>
    %62 = tpu.matmul %60, %61, %cst_29 {dimension_numbers = #tpu.dot_dimension_numbers<[1], [0], [0], [1], [0, 0, 1, 1], [], []>} : vector<8x72xbf16>, vector<72x256xbf16>, vector<8x256xf32> -> vector<8x256xf32>
    %c0_30 = arith.constant 0 : index
    %c0_31 = arith.constant 0 : index
    %63 = vector.load %arg5[%c0_30, %c0_31] : memref<8x1xf32, #tpu.memory_space<vmem>>, vector<8x1xf32>
    %64 = vector.broadcast %63 : vector<8x1xf32> to vector<8x256xf32>
    %65 = arith.addf %62, %64 : vector<8x256xf32>
    %c0_32 = arith.constant 0 : index
    %c0_33 = arith.constant 0 : index
    %c0_34 = arith.constant 0 : index
    %66 = vector.load %arg7[%c0_32, %c0_33, %c0_34] : memref<1x8x256xf32, #tpu.memory_space<vmem>>, vector<1x8x256xf32>
    %67 = vector.shape_cast %66 : vector<1x8x256xf32> to vector<8x256xf32>
    %68 = vector.shape_cast %65 : vector<8x256xf32> to vector<1x8x256xf32>
    tpu.vector_store %arg7[%c0_32, %c0_33, %c0_34], %68 {strides = array<i32>} : memref<1x8x256xf32, #tpu.memory_space<vmem>>, vector<1x8x256xf32>,
    return
  }
  func.func @transform_0(%arg0: i32) -> (i32, i32) {
    %c0_i32 = arith.constant 0 : i32
    %c0_i32_0 = arith.constant 0 : i32
    return %c0_i32, %arg0 : i32, i32
  }
  func.func @transform_1(%arg0: i32) -> (i32, i32) {
    %c0_i32 = arith.constant 0 : i32
    %c0_i32_0 = arith.constant 0 : i32
    %c0_i32_1 = arith.constant 0 : i32
    return %c0_i32, %c0_i32_0 : i32, i32
  }
  func.func @transform_2(%arg0: i32) -> (i32, i32) {
    %c0_i32 = arith.constant 0 : i32
    %c0_i32_0 = arith.constant 0 : i32
    %c0_i32_1 = arith.constant 0 : i32
    return %c0_i32, %c0_i32_0 : i32, i32
  }
  func.func @transform_3(%arg0: i32) -> (i32, i32) {
    %c0_i32 = arith.constant 0 : i32
    %c0_i32_0 = arith.constant 0 : i32
    %c0_i32_1 = arith.constant 0 : i32
    return %c0_i32, %c0_i32_0 : i32, i32
  }
  func.func @transform_4(%arg0: i32) -> (i32, i32) {
    %c0_i32 = arith.constant 0 : i32
    %c0_i32_0 = arith.constant 0 : i32
    %c0_i32_1 = arith.constant 0 : i32
    return %c0_i32, %c0_i32_0 : i32, i32
  }
  func.func @transform_5(%arg0: i32) -> (i32, i32) {
    %c0_i32 = arith.constant 0 : i32
    %c0_i32_0 = arith.constant 0 : i32
    %c0_i32_1 = arith.constant 0 : i32
    return %c0_i32, %c0_i32_0 : i32, i32
  }
  func.func @transform_6(%arg0: i32) -> (i32, i32, i32) {
    %c0_i32 = arith.constant 0 : i32
    %c0_i32_0 = arith.constant 0 : i32
    %c0_i32_1 = arith.constant 0 : i32
    return %arg0, %c0_i32, %c0_i32_0 : i32, i32, i32
  }
}

</mosaic_0001>

<llo_original>
// kernel: tpu_custom_call.1
$region0: #{tpu_custom_call.1}
  #allocation0 [shape = 'u32[]', space=smem, size = 0x4, offset = 0x4, fixed_abs, tag = 'smem constant byte address 0x4 - core index']
  #allocation1 [shape = 'u32[72,128]{1,0:T(1,128)}', space=vmem, size = 0x9000, scoped, tag = 'internal scratch']
  #allocation2 [shape = 'bf16[72,256]{1,0:T(8,128)(2,1)}', space=vmem, size = 0x9000, scoped, tag = 'scratch operand']
  %s0 = inlined_call_operand.vmem [shape: bf16[8,512], index: 0, kind: input, shape index: {}]
  %s1 = inlined_call_operand.vmem [shape: f32[8,1], index: 1, kind: input, shape index: {}]
  %s2 = inlined_call_operand.vmem [shape: f32[8,1], index: 2, kind: input, shape index: {}]
  %s3 = inlined_call_operand.vmem [shape: bf16[8,72], index: 3, kind: input, shape index: {}]
  %s4 = inlined_call_operand.vmem [shape: f32[8,1], index: 4, kind: input, shape index: {}]
  %s5 = inlined_call_operand.hbm [shape: f32[9,256], index: 5, kind: input, shape index: {}]
  %s6 = inlined_call_operand.hbm [shape: f32[2,8,256], index: 6, kind: output, shape index: {}]
  %s7 = sld [smem:[#allocation0]]
  $region61: #{tpu_custom_call.1} parent=0
    _
  %s9 = ssub.s32 1, %s7
  %s10 = scalar_select 0, %s9, %s7
  $region1: #{tpu_custom_call.1} parent=0
    #allocation3 [shape = 'u8[16384]{0}', space=vmem, size = 0x4000, scoped, tag = 'input window, operand 5, single buffered']
    #allocation4 [shape = 's32[2]{0}', space=sflag, size = 0x8, scoped, tag = 'scoped memory for tpu_custom_call.1']
    #allocation5 [shape = 's32[2]{0}', space=sflag, size = 0x8, scoped, tag = 'scoped memory for tpu_custom_call.1']
    #allocation6 [shape = 'u8[16384]{0}', space=vmem, size = 0x4000, scoped, tag = 'output window, operand 0']
    %11 = vsyncpa [#allocation4], 0
    %12 = vsyncpa [#allocation5], 0
    %s13 = scalar_lea.sflag [#allocation5], 1
    %14 = vsyncpa %s13, 0
    loop: start=0, step=1, limit=4
    $region2: #{tpu_custom_call.1} parent=1 // loop_pre_header
      _
    $region3: #{tpu_custom_call.1} parent=1 // loop_header
      %s16 = sphi 0, %s20
      %p17 = scmp.ge.s32.totalorder %s16, 4
      %s26 = sphi 0, %s28
      %s29 = sphi 0, %s26
      %s30 = sphi 0, %s29
      %s46 = sphi 0, %s30
      %s50 = sphi 0, %s50
      %s52 = sphi 0, %s50
      %s53 = sphi 0, %s52
      %s67 = sphi 0, %s53
      %s71 = sphi 0, %s71
      %s73 = sphi 0, %s71
      %s74 = sphi 0, %s73
      %s88 = sphi 0, %s74
      %s92 = sphi 0, %s92
      %s94 = sphi 0, %s92
      %s95 = sphi 0, %s94
      %s109 = sphi 0, %s95
      %s113 = sphi 0, %s113
      %s115 = sphi 0, %s113
      %s116 = sphi 0, %s115
      %s130 = sphi 0, %s116
      %s134 = sphi 0, %s134
      %s136 = sphi 0, %s134
      %s137 = sphi 0, %s136
      %s151 = sphi 0, %s137
      %s157 = sphi 0, %s159
      %s160 = sphi 0, %s157
      %s161 = sphi 0, %s160
      %s177 = sphi 0, %s161
    $region4: #{tpu_custom_call.1} parent=1 // loop_header_branch
      %19 = sbr.rel (%p17) target = $region8
    $region5: #{tpu_custom_call.1} parent=1 // loop_body
      %s21 = ssub.s32 %s16, 1
      %s22 = ssub.s32 %s16, 2
      %s23 = sadd.s32 %s16, 1
      %s24 = ssub.s32 %s16, %s23
      %p25 = scmp.eq.s32.totalorder %s24, 0
      %s27 = sadd.s32 %s26, 1
      %s28 = scalar_select %p25, %s26, %s27
      %p31 = pneg %p25
      %p32 = scmp.eq.s32.totalorder %s16, 1
      %p33 = por %p31, %p32
      %p34 = scmp.ne.s32.totalorder %s26, %s29
      %p35 = scmp.eq.s32.totalorder %s16, 0
      %p36 = por %p34, %p35
      %p37 = scmp.ne.s32.totalorder %s26, %s29
      %p38 = scmp.eq.s32.totalorder %s21, 1
      %p39 = por %p37, %p38
      %p40 = scmp.ne.s32.totalorder %s29, %s30
      %p41 = scmp.eq.s32.totalorder %s21, 0
      %p42 = por %p40, %p41
      %p43 = scmp.ne.s32.totalorder %s29, %s30
      %p44 = scmp.eq.s32.totalorder %s22, 1
      %p45 = por %p43, %p44
      %p47 = scmp.ne.s32.totalorder %s30, %s46
      %p48 = scmp.eq.s32.totalorder %s22, 0
      %p49 = por %p47, %p48
      %s51 = sadd.s32 %s50, 1
      %p54 = scmp.eq.s32.totalorder %s16, 1
      %p55 = scmp.ne.s32.totalorder %s50, %s52
      %p56 = scmp.eq.s32.totalorder %s16, 0
      %p57 = por %p55, %p56
      %p58 = scmp.ne.s32.totalorder %s50, %s52
      %p59 = scmp.eq.s32.totalorder %s21, 1
      %p60 = por %p58, %p59
      %p61 = scmp.ne.s32.totalorder %s52, %s53
      %p62 = scmp.eq.s32.totalorder %s21, 0
      %p63 = por %p61, %p62
      %p64 = scmp.ne.s32.totalorder %s52, %s53
      %p65 = scmp.eq.s32.totalorder %s22, 1
      %p66 = por %p64, %p65
      %p68 = scmp.ne.s32.totalorder %s53, %s67
      %p69 = scmp.eq.s32.totalorder %s22, 0
      %p70 = por %p68, %p69
      %s72 = sadd.s32 %s71, 1
      %p75 = scmp.eq.s32.totalorder %s16, 1
      %p76 = scmp.ne.s32.totalorder %s71, %s73
      %p77 = scmp.eq.s32.totalorder %s16, 0
      %p78 = por %p76, %p77
      %p79 = scmp.ne.s32.totalorder %s71, %s73
      %p80 = scmp.eq.s32.totalorder %s21, 1
      %p81 = por %p79, %p80
      %p82 = scmp.ne.s32.totalorder %s73, %s74
      %p83 = scmp.eq.s32.totalorder %s21, 0
      %p84 = por %p82, %p83
      %p85 = scmp.ne.s32.totalorder %s73, %s74
      %p86 = scmp.eq.s32.totalorder %s22, 1
      %p87 = por %p85, %p86
      %p89 = scmp.ne.s32.totalorder %s74, %s88
      %p90 = scmp.eq.s32.totalorder %s22, 0
      %p91 = por %p89, %p90
      %s93 = sadd.s32 %s92, 1
      %p96 = scmp.eq.s32.totalorder %s16, 1
      %p97 = scmp.ne.s32.totalorder %s92, %s94
      %p98 = scmp.eq.s32.totalorder %s16, 0
      %p99 = por %p97, %p98
      %p100 = scmp.ne.s32.totalorder %s92, %s94
      %p101 = scmp.eq.s32.totalorder %s21, 1
      %p102 = por %p100, %p101
      %p103 = scmp.ne.s32.totalorder %s94, %s95
      %p104 = scmp.eq.s32.totalorder %s21, 0
      %p105 = por %p103, %p104
      %p106 = scmp.ne.s32.totalorder %s94, %s95
      %p107 = scmp.eq.s32.totalorder %s22, 1
      %p108 = por %p106, %p107
      %p110 = scmp.ne.s32.totalorder %s95, %s109
      %p111 = scmp.eq.s32.totalorder %s22, 0
      %p112 = por %p110, %p111
      %s114 = sadd.s32 %s113, 1
      %p117 = scmp.eq.s32.totalorder %s16, 1
      %p118 = scmp.ne.s32.totalorder %s113, %s115
      %p119 = scmp.eq.s32.totalorder %s16, 0
      %p120 = por %p118, %p119
      %p121 = scmp.ne.s32.totalorder %s113, %s115
      %p122 = scmp.eq.s32.totalorder %s21, 1
      %p123 = por %p121, %p122
      %p124 = scmp.ne.s32.totalorder %s115, %s116
      %p125 = scmp.eq.s32.totalorder %s21, 0
      %p126 = por %p124, %p125
      %p127 = scmp.ne.s32.totalorder %s115, %s116
      %p128 = scmp.eq.s32.totalorder %s22, 1
      %p129 = por %p127, %p128
      %p131 = scmp.ne.s32.totalorder %s116, %s130
      %p132 = scmp.eq.s32.totalorder %s22, 0
      %p133 = por %p131, %p132
      %s135 = sadd.s32 %s134, 1
      %p138 = scmp.eq.s32.totalorder %s16, 1
      %p139 = scmp.ne.s32.totalorder %s134, %s136
      %p140 = scmp.eq.s32.totalorder %s16, 0
      %p141 = por %p139, %p140
      %p142 = scmp.ne.s32.totalorder %s134, %s136
      %p143 = scmp.eq.s32.totalorder %s21, 1
      %p144 = por %p142, %p143
      %p145 = scmp.ne.s32.totalorder %s136, %s137
      %p146 = scmp.eq.s32.totalorder %s21, 0
      %p147 = por %p145, %p146
      %p148 = scmp.ne.s32.totalorder %s136, %s137
      %p149 = scmp.eq.s32.totalorder %s22, 1
      %p150 = por %p148, %p149
      %p152 = scmp.ne.s32.totalorder %s137, %s151
      %p153 = scmp.eq.s32.totalorder %s22, 0
      %p154 = por %p152, %p153
      %s155 = ssub.s32 %s16, %s23
      %p156 = scmp.eq.s32.totalorder %s155, 0
      %s158 = sadd.s32 %s157, 1
      %s159 = scalar_select %p156, %s157, %s158
      %p162 = pneg %p156
      %p163 = scmp.eq.s32.totalorder %s16, 1
      %p164 = por %p162, %p163
      %p165 = scmp.ne.s32.totalorder %s157, %s160
      %p166 = scmp.eq.s32.totalorder %s16, 0
      %p167 = por %p165, %p166
      %p168 = scmp.ne.s32.totalorder %s157, %s160
      %p169 = scmp.eq.s32.totalorder %s21, 1
      %p170 = por %p168, %p169
      %p171 = scmp.ne.s32.totalorder %s160, %s161
      %p172 = scmp.eq.s32.totalorder %s21, 0
      %p173 = por %p171, %p172
      %p174 = scmp.ne.s32.totalorder %s160, %s161
      %p175 = scmp.eq.s32.totalorder %s22, 1
      %p176 = por %p174, %p175
      %p178 = scmp.ne.s32.totalorder %s161, %s177
      %p179 = scmp.eq.s32.totalorder %s22, 0
      %p180 = por %p178, %p179
      %p181 = scmp.le.s32.totalorder 1, %s16
      %p182 = scmp.lt.s32.totalorder %s16, 3
      %p183 = pnand %p181, %p182
      %p184 = pneg %p183
      // Predicated region
      $region9: #{tpu_custom_call.1} parent=5 // pred_check
        _
      $region10: #{tpu_custom_call.1} parent=5 // pred_check_branch
        %186 = sbr.rel (%p183) target = $region12
      $region11: #{tpu_custom_call.1} parent=5 // pred_region
        %s187 = ssub.s32 %s16, 1
        // Predicated region
        $region13: #{tpu_custom_call.1} parent=11 // pred_check
          %p188 = pneg %p63
        $region14: #{tpu_custom_call.1} parent=11 // pred_check_branch
          %190 = sbr.rel (%p188) target = $region16
        $region15: #{tpu_custom_call.1} parent=11 // pred_region
          _
        $region16: #{tpu_custom_call.1} parent=11 // pred_fallthru
          _
        // Predicated region
        $region17: #{tpu_custom_call.1} parent=11 // pred_check
          %p191 = pneg %p84
        $region18: #{tpu_custom_call.1} parent=11 // pred_check_branch
          %193 = sbr.rel (%p191) target = $region20
        $region19: #{tpu_custom_call.1} parent=11 // pred_region
          _
        $region20: #{tpu_custom_call.1} parent=11 // pred_fallthru
          _
        // Predicated region
        $region21: #{tpu_custom_call.1} parent=11 // pred_check
          %p194 = pneg %p105
        $region22: #{tpu_custom_call.1} parent=11 // pred_check_branch
          %196 = sbr.rel (%p194) target = $region24
        $region23: #{tpu_custom_call.1} parent=11 // pred_region
          _
        $region24: #{tpu_custom_call.1} parent=11 // pred_fallthru
          _
        // Predicated region
        $region25: #{tpu_custom_call.1} parent=11 // pred_check
          %p197 = pneg %p126
        $region26: #{tpu_custom_call.1} parent=11 // pred_check_branch
          %199 = sbr.rel (%p197) target = $region28
        $region27: #{tpu_custom_call.1} parent=11 // pred_region
          _
        $region28: #{tpu_custom_call.1} parent=11 // pred_fallthru
          _
        // Predicated region
        $region29: #{tpu_custom_call.1} parent=11 // pred_check
          %p200 = pneg %p147
        $region30: #{tpu_custom_call.1} parent=11 // pred_check_branch
          %202 = sbr.rel (%p200) target = $region32
        $region31: #{tpu_custom_call.1} parent=11 // pred_region
          %204 = vsyncadd [#allocation4], 0
          %s205 = sshll.u32 %s5, 4
          %s206 = int_to_ptr.hbm [resolvable:$true] %s205
          %s207 = sshll.u32 [#allocation3], 4
          %s208 = int_to_ptr.vmem [resolvable:$true] %s207
          %213 = dma.hbm_to_vmem [thread:$0]  %s206, 512, %s208, [#allocation4], 256, 256, 16
        $region32: #{tpu_custom_call.1} parent=11 // pred_fallthru
          _
      $region12: #{tpu_custom_call.1} parent=5 // pred_fallthru
        _
      %p214 = scmp.lt.s32.totalorder %s16, 2
      // Predicated region
      $region33: #{tpu_custom_call.1} parent=5 // pred_check
        %p215 = pneg %p214
      $region34: #{tpu_custom_call.1} parent=5 // pred_check_branch
        %217 = sbr.rel (%p215) target = $region36
      $region35: #{tpu_custom_call.1} parent=5 // pred_region
        // Predicated region
        $region37: #{tpu_custom_call.1} parent=35 // pred_check
          %p218 = pneg %p36
        $region38: #{tpu_custom_call.1} parent=35 // pred_check_branch
          %220 = sbr.rel (%p218) target = $region40
        $region39: #{tpu_custom_call.1} parent=35 // pred_region
          %s221 = smul.u32 2, %s16
          %p222 = scmp.lt.s32.totalorder %s221, 3
          %s223 = scalar_select %p222, %s221, 3
          %s224 = smul.addr %s223, 4
          %s225 = scalar_lea.vmem %s0, %s224
          %s226 = smul.u32 2, %s16
        $region40: #{tpu_custom_call.1} parent=35 // pred_fallthru
          _
      $region36: #{tpu_custom_call.1} parent=5 // pred_fallthru
        _
      %p227 = scmp.le.s32.totalorder 1, %s16
      %p228 = scmp.lt.s32.totalorder %s16, 3
      %p229 = pnand %p227, %p228
      %p230 = pneg %p229
      // Predicated region
      $region41: #{tpu_custom_call.1} parent=5 // pred_check
        _
      $region42: #{tpu_custom_call.1} parent=5 // pred_check_branch
        %232 = sbr.rel (%p229) target = $region44
      $region43: #{tpu_custom_call.1} parent=5 // pred_region
        %s233 = ssub.s32 %s16, 1
        // Predicated region
        $region45: #{tpu_custom_call.1} parent=43 // pred_check
          %p234 = pneg %p147
        $region46: #{tpu_custom_call.1} parent=43 // pred_check_branch
          %236 = sbr.rel (%p234) target = $region48
        $region47: #{tpu_custom_call.1} parent=43 // pred_region
          %238 = dma.done [#allocation4], 512
        $region48: #{tpu_custom_call.1} parent=43 // pred_fallthru
          _
        %s239 = smul.u32 2, %s21
        %p240 = scmp.lt.s32.totalorder %s239, 3
        %s241 = scalar_select %p240, %s239, 3
        %s242 = smul.addr %s241, 4
        %s243 = scalar_lea.vmem %s0, %s242
        %p244 = pneg %p42
        %p245 = pneg %p39
        %p246 = pneg %p63
        %p247 = pneg %p60
        %p248 = pneg %p84
        %p249 = pneg %p81
        %p250 = pneg %p105
        %p251 = pneg %p102
        %p252 = pneg %p126
        %p253 = pneg %p123
        %p254 = pneg %p147
        %p255 = pneg %p144
        %p256 = pneg %p173
        %p257 = pneg %p170
        %s258 = sand.u32 %s160, 1
        %s259 = scalar_lea.sflag [#allocation5], %s258
        %s260 = sand.u32 %s160, 1
        %s261 = smul.addr %s260, 16
        %s262 = scalar_lea.vmem [#allocation6], %s261
        %s263 = smul.u32 2, %s21
        %p264 = scmp.lt.s32.totalorder %s263, 3
        %s265 = scalar_select %p264, %s263, 3
        %s266 = smul.addr %s265, 4
        %s267 = scalar_lea.vmem %s0, %s266
        %s268 = smul.u32 2, %s21
        %v270 = vld [vmem:[%s267] sm:$0xff]
        %v271 = vunpack.c.l.bf16 %v270
        %v272 = vunpack.c.h.bf16 %v270
        %v273 = vld [vmem:[%s1] sm:$0xff]
        %275 = vset.pattern.permute.xlu0 0
        %276 = vperm.xlu0 %275, %v273
        %v277 = vpop.permute.xlu0 %276
        %v279 = vmul.f32 %v271, %v277
        %v280 = vmul.f32 %v272, %v277
        %v281 = vld [vmem:[%s2] sm:$0xff]
        %283 = vset.pattern.permute.xlu0 0
        %284 = vperm.xlu0 %283, %v281
        %v285 = vpop.permute.xlu0 %284
        %v287 = vadd.f32 %v279, %v285
        %v288 = vadd.f32 %v280, %v285
        %v289 = vmax.f32 %v287, 0.0
        %v290 = vmax.f32 %v288, 0.0
        %291 = vrot.lane.b32.xlu0 %v289, 17
        %v292 = vpop.permute.xlu0 %291
        %293 = vrot.lane.b32.xlu0 %v290, 17
        %v294 = vpop.permute.xlu0 %293
        %v295 = vlaneseq
        %v296 = vand.u32 %v295, 127
        %vm297 = vcmp.lt.s32.totalorder %v296, 17
        %v298 = vsel %vm297, %v292, %v294
        %v299 = vsel %vm297, %v294, %v292
        %v300 = vld [vmem:[#allocation3] ss:$8 sm:$0x3]
        %v302 = vperm.slane %v300, 0
        %v303 = vperm.slane %v300, 1
        %v306 = vmul.f32 %v299, %v302
        %v307 = vmul.f32 %v298, %v303
        %v308 = vpack.c.bf16 %v307, %v306
        %309 = vst [vmem:[#allocation2] sm:$0xff] %v308
        %310 = vrot.lane.b32.xlu0 %v289, 16
        %v311 = vpop.permute.xlu0 %310
        %312 = vrot.lane.b32.xlu0 %v290, 16
        %v313 = vpop.permute.xlu0 %312
        %vm314 = vcmp.lt.s32.totalorder %v296, 16
        %v315 = vsel %vm314, %v311, %v313
        %v316 = vsel %vm314, %v313, %v311
        %s317 = scalar_lea.vmem [#allocation3], 1
        %v318 = vld [vmem:[%s317] ss:$8 sm:$0x3]
        %v320 = vperm.slane %v318, 0
        %v321 = vperm.slane %v318, 1
        %v324 = vmul.f32 %v316, %v320
        %v325 = vmul.f32 %v315, %v321
        %v326 = vpack.c.bf16 %v325, %v324
        %327 = vst [vmem:[#allocation2 + $0x8] sm:$0xff] %v326
        %328 = vrot.lane.b32.xlu0 %v289, 15
        %v329 = vpop.permute.xlu0 %328
        %330 = vrot.lane.b32.xlu0 %v290, 15
        %v331 = vpop.permute.xlu0 %330
        %vm332 = vcmp.lt.s32.totalorder %v296, 15
        %v333 = vsel %vm332, %v329, %v331
        %v334 = vsel %vm332, %v331, %v329
        %s335 = scalar_lea.vmem [#allocation3], 2
        %v336 = vld [vmem:[%s335] ss:$8 sm:$0x3]
        %v338 = vperm.slane %v336, 0
        %v339 = vperm.slane %v336, 1
        %v342 = vmul.f32 %v334, %v338
        %v343 = vmul.f32 %v333, %v339
        %v344 = vpack.c.bf16 %v343, %v342
        %345 = vst [vmem:[#allocation2 + $0x10] sm:$0xff] %v344
        %346 = vrot.lane.b32.xlu0 %v289, 1
        %v347 = vpop.permute.xlu0 %346
        %348 = vrot.lane.b32.xlu0 %v290, 1
        %v349 = vpop.permute.xlu0 %348
        %vm350 = vcmp.lt.s32.totalorder %v296, 1
        %v351 = vsel %vm350, %v347, %v349
        %v352 = vsel %vm350, %v349, %v347
        %s353 = scalar_lea.vmem [#allocation3], 3
        %v354 = vld [vmem:[%s353] ss:$8 sm:$0x3]
        %v356 = vperm.slane %v354, 0
        %v357 = vperm.slane %v354, 1
        %v360 = vmul.f32 %v352, %v356
        %v361 = vmul.f32 %v351, %v357
        %v362 = vpack.c.bf16 %v361, %v360
        %363 = vst [vmem:[#allocation2 + $0x18] sm:$0xff] %v362
        %v364 = vpack.c.bf16 %v290, %v289
        %365 = vst [vmem:[#allocation2 + $0x20] sm:$0xff] %v364
        %366 = vrot.lane.b32.xlu0 %v289, 127
        %v367 = vpop.permute.xlu0 %366
        %368 = vrot.lane.b32.xlu0 %v290, 127
        %v369 = vpop.permute.xlu0 %368
        %vm370 = vcmp.lt.s32.totalorder %v296, 127
        %v371 = vsel %vm370, %v367, %v369
        %v372 = vsel %vm370, %v369, %v367
        %s373 = scalar_lea.vmem [#allocation3], 5
        %v374 = vld [vmem:[%s373] ss:$8 sm:$0x3]
        %v376 = vperm.slane %v374, 0
        %v377 = vperm.slane %v374, 1
        %v380 = vmul.f32 %v371, %v376
        %v381 = vmul.f32 %v372, %v377
        %v382 = vpack.c.bf16 %v381, %v380
        %383 = vst [vmem:[#allocation2 + $0x28] sm:$0xff] %v382
        %384 = vrot.lane.b32.xlu0 %v289, 113
        %v385 = vpop.permute.xlu0 %384
        %386 = vrot.lane.b32.xlu0 %v290, 113
        %v387 = vpop.permute.xlu0 %386
        %vm388 = vcmp.lt.s32.totalorder %v296, 113
        %v389 = vsel %vm388, %v385, %v387
        %v390 = vsel %vm388, %v387, %v385
        %s391 = scalar_lea.vmem [#allocation3], 6
        %v392 = vld [vmem:[%s391] ss:$8 sm:$0x3]
        %v394 = vperm.slane %v392, 0
        %v395 = vperm.slane %v392, 1
        %v398 = vmul.f32 %v389, %v394
        %v399 = vmul.f32 %v390, %v395
        %v400 = vpack.c.bf16 %v399, %v398
        %401 = vst [vmem:[#allocation2 + $0x30] sm:$0xff] %v400
        %402 = vrot.lane.b32.xlu0 %v289, 112
        %v403 = vpop.permute.xlu0 %402
        %404 = vrot.lane.b32.xlu0 %v290, 112
        %v405 = vpop.permute.xlu0 %404
        %vm406 = vcmp.lt.s32.totalorder %v296, 112
        %v407 = vsel %vm406, %v403, %v405
        %v408 = vsel %vm406, %v405, %v403
        %s409 = scalar_lea.vmem [#allocation3], 7
        %v410 = vld [vmem:[%s409] ss:$8 sm:$0x3]
        %v412 = vperm.slane %v410, 0
        %v413 = vperm.slane %v410, 1
        %v416 = vmul.f32 %v407, %v412
        %v417 = vmul.f32 %v408, %v413
        %v418 = vpack.c.bf16 %v417, %v416
        %419 = vst [vmem:[#allocation2 + $0x38] sm:$0xff] %v418
        %420 = vrot.lane.b32.xlu0 %v289, 111
        %v421 = vpop.permute.xlu0 %420
        %422 = vrot.lane.b32.xlu0 %v290, 111
        %v423 = vpop.permute.xlu0 %422
        %vm424 = vcmp.lt.s32.totalorder %v296, 111
        %v425 = vsel %vm424, %v421, %v423
        %v426 = vsel %vm424, %v423, %v421
        %s427 = scalar_lea.vmem [#allocation3], 16
        %v428 = vld [vmem:[%s427] ss:$8 sm:$0x3]
        %v430 = vperm.slane %v428, 0
        %v431 = vperm.slane %v428, 1
        %v434 = vmul.f32 %v425, %v430
        %v435 = vmul.f32 %v426, %v431
        %v436 = vpack.c.bf16 %v435, %v434
        %437 = vst [vmem:[#allocation2 + $0x40] sm:$0xff] %v436
        %v438 = vld [vmem:[%s3] sm:$0xf]
        %v439 = vld [vmem:[#allocation2] sm:$0xff]
        %v440 = vld [vmem:[#allocation2 + $0x8] sm:$0xff]
        %v441 = vld [vmem:[#allocation2 + $0x10] sm:$0xff]
        %v442 = vld [vmem:[#allocation2 + $0x18] sm:$0xff]
        %v443 = vld [vmem:[#allocation2 + $0x20] sm:$0xff]
        %v444 = vld [vmem:[#allocation2 + $0x28] sm:$0xff]
        %v445 = vld [vmem:[#allocation2 + $0x30] sm:$0xff]
        %v446 = vld [vmem:[#allocation2 + $0x38] sm:$0xff]
        %v447 = vld [vmem:[#allocation2 + $0x40] sm:$0xff]
        %v448 = vld [vmem:[%s4] sm:$0xff]
        %450 = vset.pattern.permute.xlu0 0
        %451 = vperm.xlu0 %450, %v448
        %v452 = vpop.permute.xlu0 %451
        %v463 = vunpack.c.l.b16 %v439
        %v464 = vunpack.c.h.b16 %v439
        %v465 = vunpack.c.l.b16 %v440
        %v466 = vunpack.c.h.b16 %v440
        %v467 = vunpack.c.l.b16 %v441
        %v468 = vunpack.c.h.b16 %v441
        %v469 = vunpack.c.l.b16 %v442
        %v470 = vunpack.c.h.b16 %v442
        %v471 = vunpack.c.l.b16 %v443
        %v472 = vunpack.c.h.b16 %v443
        %v473 = vunpack.c.l.b16 %v444
        %v474 = vunpack.c.h.b16 %v444
        %v475 = vunpack.c.l.b16 %v445
        %v476 = vunpack.c.h.b16 %v445
        %v477 = vunpack.c.l.b16 %v446
        %v478 = vunpack.c.h.b16 %v446
        %v479 = vunpack.c.l.b16 %v447
        %v480 = vunpack.c.h.b16 %v447
        %v481 = vpack.c.b16 %v465, %v463
        %v482 = vpack.c.b16 %v466, %v464
        %v483 = vpack.c.b16 %v469, %v467
        %v484 = vpack.c.b16 %v470, %v468
        %v485 = vpack.c.b16 %v473, %v471
        %v486 = vpack.c.b16 %v474, %v472
        %v487 = vpack.c.b16 %v477, %v475
        %v488 = vpack.c.b16 %v478, %v476
        %v489 = vpack.c.b16 %v479, %v479
        %v490 = vpack.c.b16 %v480, %v480
        %vm499 = vcmask 588800
        %v501 = vsel %vm499, %v438, 0
        %vm503 = vcmask 1043456
        %v505 = vsel %vm503, %v489, 0
        %v508 = vsel %vm503, %v490, 0
        %510 = vmatpush.bf16.msra.mxu0 0
        %511 = vmatpush.bf16.msra.mxu0 0
        %512 = vmatpush.bf16.msra.mxu0 0
        %513 = vmatpush.bf16.msra.mxu0 %v505
        %514 = vmatpush.bf16.msra.mxu0 %v487
        %515 = vmatpush.bf16.msra.mxu0 %v485
        %516 = vmatpush.bf16.msra.mxu0 %v483
        %517 = vmatpush.bf16.msra.mxu0 %v481
        %518 = vmatmul.bf16.gmra.mxu0 %v501
        %v519 = vpop.f32.mrf.mxu0
        %v520 = vadd.f32 %v452, %v519
        %v521 = vpop.f32.mrf.mxu0
        %522 = vdwg.mxu0
        %523 = vmatpush.bf16.msra.mxu0 0
        %524 = vmatpush.bf16.msra.mxu0 0
        %525 = vmatpush.bf16.msra.mxu0 0
        %526 = vmatpush.bf16.msra.mxu0 %v508
        %527 = vmatpush.bf16.msra.mxu0 %v488
        %528 = vmatpush.bf16.msra.mxu0 %v486
        %529 = vmatpush.bf16.msra.mxu0 %v484
        %530 = vmatpush.bf16.msra.mxu0 %v482
        %531 = vmatmul.bf16.gmra.mxu0 %v501
        %v532 = vpop.f32.mrf.mxu0
        %v533 = vadd.f32 %v452, %v532
        %v534 = vpop.f32.mrf.mxu0
        %535 = vdwg.mxu0
        %536 = vst [vmem:[%s262] sm:$0xff] %v520
        %537 = vst [vmem:[%s262 + $0x8] sm:$0xff] %v533
        %s538 = sand.u32 %s160, 1
        %s539 = scalar_lea.sflag [#allocation5], %s538
        %s540 = sand.u32 %s160, 1
        %s541 = smul.addr %s540, 16
        %s542 = scalar_lea.vmem [#allocation6], %s541
        // Predicated region
        $region49: #{tpu_custom_call.1} parent=43 // pred_check
          %p543 = pneg %p170
        $region50: #{tpu_custom_call.1} parent=43 // pred_check_branch
          %545 = sbr.rel (%p543) target = $region52
        $region51: #{tpu_custom_call.1} parent=43 // pred_region
          %547 = vsyncadd %s539, 0
          %s548 = smul.addr %s21, 2
          %s549 = smul.addr %s548, 8
          %s550 = scalar_lea.hbm %s6, %s549
          %s552 = sshll.u32 %s542, 4
          %s553 = int_to_ptr.vmem [resolvable:$true] %s552
          %s554 = sshll.u32 %s550, 4
          %s555 = int_to_ptr.hbm [resolvable:$true] %s554
          %557 = dma.vmem_to_hbm [thread:$0]  %s553, 256, %s555, %s539
        $region52: #{tpu_custom_call.1} parent=43 // pred_fallthru
          _
      $region44: #{tpu_custom_call.1} parent=5 // pred_fallthru
        _
      %p558 = scmp.le.s32.totalorder 2, %s16
      // Predicated region
      $region53: #{tpu_custom_call.1} parent=5 // pred_check
        %p559 = pneg %p558
      $region54: #{tpu_custom_call.1} parent=5 // pred_check_branch
        %561 = sbr.rel (%p559) target = $region56
      $region55: #{tpu_custom_call.1} parent=5 // pred_region
        %s562 = ssub.s32 %s16, 2
        // Predicated region
        $region57: #{tpu_custom_call.1} parent=55 // pred_check
          %p563 = pneg %p176
        $region58: #{tpu_custom_call.1} parent=55 // pred_check_branch
          %565 = sbr.rel (%p563) target = $region60
        $region59: #{tpu_custom_call.1} parent=55 // pred_region
          %s566 = sand.u32 %s161, 1
          %s567 = scalar_lea.sflag [#allocation5], %s566
          %s568 = sand.u32 %s161, 1
          %s569 = smul.addr %s568, 16
          %s570 = scalar_lea.vmem [#allocation6], %s569
          %572 = dma.done %s567, 256
        $region60: #{tpu_custom_call.1} parent=55 // pred_fallthru
          _
      $region56: #{tpu_custom_call.1} parent=5 // pred_fallthru
        _
    $region6: #{tpu_custom_call.1} parent=1 // loop_footer
      %s20 = sadd.s32 1, %s16
    $region7: #{tpu_custom_call.1} parent=1 // loop_footer_branch
      %15 = sbr.rel target = $region3
    $region8: #{tpu_custom_call.1} parent=1 // loop_exit
      _
    %573 = vsyncpa [#allocation4], 1
    %s574 = scalar_lea.sflag [#allocation4], 1
    %575 = vsyncpa %s574, 1
    %576 = vsyncpa [#allocation5], 1
    %s577 = scalar_lea.sflag [#allocation5], 1
    %578 = vsyncpa %s577, 1

</llo_original>
